<compile_context>
chip_gen: v7x
topology: tpu7x:2x2x1
jax: 0.10.0
libtpu: 0.0.40
codegen_flags: <defaults>
</compile_context>

<pallas_src>
import functools

import jax
import jax.numpy as jnp
from jax.experimental import pallas as pl
from jax.experimental.pallas import tpu as pltpu

DATA_DIM = 2
LEAKY_SLOPE = 0.01  # PyTorch nn.LeakyReLU default


def _round_up(x, m):
    return ((x + m - 1) // m) * m


def decgm_kernel(zt_ref, w1_ref, b1_ref, w2_ref, b2_ref, out_ref):
    zt = zt_ref[...]            # (latent, TB)  f32, batch on lanes
    w1 = w1_ref[...]            # (emb, latent) f32
    latent = w1.shape[1]

    # ---- Layer 1: h_T = W1 @ z_T + b1, K = latent_dim (<= 2) => VPU FMAs ----
    acc = w1[:, 0:1] * zt[0:1, :]                       # (emb, TB)
    for k in range(1, latent):                          # statically unrolled
        acc = acc + w1[:, k:k + 1] * zt[k:k + 1, :]
    acc = acc + b1_ref[...]                             # (emb, 1) broadcast

    # ---- LeakyReLU (negative_slope = 0.01) ----
    h = jnp.where(acc > 0, acc, LEAKY_SLOPE * acc)      # (emb, TB)

    # ---- Layer 2: x_T = W2 @ h_T + b2 on the MXU, f32 accumulation ----
    xt = jnp.dot(w2_ref[...], h, preferred_element_type=jnp.float32)
    out_ref[...] = (xt + b2_ref[...]).astype(out_ref.dtype)


@functools.partial(jax.jit, static_argnames=("block_b",))
def decgm_forward(z, w1, b1, w2, b2, *, block_b=512):
    """z: (B, latent_dim) f32. w1: (emb, latent), b1: (emb,), w2: (2, emb), b2: (2,).

    Returns (x_hat (B, DATA_DIM), scalar 0.75) matching DecGM.forward(_, z).
    """
    B, latent_dim = z.shape
    emb_dim = w1.shape[0]

    # Batch tile: multiple of 128 (lane width), capped by block_b; pad B up to
    # a whole number of tiles so every store is a full lane-dense tile.
    tb = min(block_b, _round_up(B, 128))
    b_pad = _round_up(B, tb)
    grid = (b_pad // tb,)

    # Batch-on-lanes layout: z_T is (latent, B_pad); zero-pad the extra columns.
    zt = jnp.pad(z.T, ((0, 0), (0, b_pad - B)))
    b1_2d = b1.reshape(emb_dim, 1)
    b2_2d = b2.reshape(DATA_DIM, 1)

    xt = pl.pallas_call(
        decgm_kernel,
        out_shape=jax.ShapeDtypeStruct((DATA_DIM, b_pad), z.dtype),
        grid=grid,
        in_specs=[
            pl.BlockSpec((latent_dim, tb), lambda i: (0, i)),     # z_T tile
            pl.BlockSpec((emb_dim, latent_dim), lambda i: (0, 0)),  # W1 resident
            pl.BlockSpec((emb_dim, 1), lambda i: (0, 0)),           # b1 resident
            pl.BlockSpec((DATA_DIM, emb_dim), lambda i: (0, 0)),    # W2 resident
            pl.BlockSpec((DATA_DIM, 1), lambda i: (0, 0)),          # b2 resident
        ],
        out_specs=pl.BlockSpec((DATA_DIM, tb), lambda i: (0, i)),
        compiler_params=pltpu.CompilerParams(
            dimension_semantics=("parallel",)),  # megacore-shard batch on v7x
    )(zt, w1, b1_2d, w2, b2_2d)

    x_hat = xt[:, :B].T                                  # back to (B, DATA_DIM)
    return x_hat, jnp.float32(0.75)


def init_params(key, latent_dim, emb_dim):
    """Deterministic init mimicking nn.Linear (uniform(-1/sqrt(fan_in), ...)).

    Weights are in native PyTorch layout: (out_features, in_features)."""
    k1, k2, k3, k4 = jax.random.split(key, 4)
    bound1 = 1.0 / jnp.sqrt(latent_dim)
    bound2 = 1.0 / jnp.sqrt(emb_dim)
    w1 = jax.random.uniform(k1, (emb_dim, latent_dim), jnp.float32, -bound1, bound1)
    b1 = jax.random.uniform(k2, (emb_dim,), jnp.float32, -bound1, bound1)
    w2 = jax.random.uniform(k3, (DATA_DIM, emb_dim), jnp.float32, -bound2, bound2)
    b2 = jax.random.uniform(k4, (DATA_DIM,), jnp.float32, -bound2, bound2)
    return w1, b1, w2, b2


if __name__ == "__main__":
    # flags.class_dim (latent_dim) must be <= data_dim (=2); flags.emb_dim small.
    latent_dim = 2
    emb_dim = 32
    batch = 8

    key = jax.random.PRNGKey(0)
    kz, kp = jax.random.split(key)
    z = jax.random.normal(kz, (batch, latent_dim), dtype=jnp.float32)
    w1, b1, w2, b2 = init_params(kp, latent_dim, emb_dim)

    x_hat, const = decgm_forward(z, w1, b1, w2, b2)
    jax.block_until_ready(x_hat)
    jax.block_until_ready(const)

    # Pure-JAX reference of the same forward math (standard (B, F) layout).
    h_ref = z @ w1.T + b1
    h_ref = jnp.where(h_ref > 0, h_ref, LEAKY_SLOPE * h_ref)
    x_ref = h_ref @ w2.T + b2
    assert x_hat.shape == (batch, DATA_DIM)
    assert jnp.allclose(x_hat, x_ref, atol=1e-5, rtol=1e-5)
    assert float(const) == 0.75

    print("KERNEL_OK")
</pallas_src>

<mosaic_0001>
module attributes {stable_mosaic.version = 11 : i64} {
  func.func @decgm_kernel(%arg0: i32, %arg1: memref<2x128xf32, #tpu.memory_space<vmem>>, %arg2: memref<32x2xf32, #tpu.memory_space<vmem>>, %arg3: memref<32x1xf32, #tpu.memory_space<vmem>>, %arg4: memref<2x32xf32, #tpu.memory_space<vmem>>, %arg5: memref<2x1xf32, #tpu.memory_space<vmem>>, %arg6: memref<2x128xf32, #tpu.memory_space<vmem>>) attributes {dimension_semantics = [#tpu.dimension_semantics<parallel>], iteration_bounds = array<i64: 1>, scalar_prefetch = 0 : i64, scratch_operands = 0 : i64, tpu.core_type = #tpu.core_type<tc>, window_params = [{transform_indices = @transform_0, window_bounds = array<i64: 2, 128>}, {pipeline_mode = #tpu.pipeline_mode<synchronous>, transform_indices = @transform_1, window_bounds = array<i64: 32, 2>}, {pipeline_mode = #tpu.pipeline_mode<synchronous>, transform_indices = @transform_2, window_bounds = array<i64: 32, 1>}, {pipeline_mode = #tpu.pipeline_mode<synchronous>, transform_indices = @transform_3, window_bounds = array<i64: 2, 32>}, {pipeline_mode = #tpu.pipeline_mode<synchronous>, transform_indices = @transform_4, window_bounds = array<i64: 2, 1>}, {transform_indices = @transform_5, window_bounds = array<i64: 2, 128>}]} {
    %c0 = arith.constant 0 : index
    %c0_0 = arith.constant 0 : index
    %0 = vector.load %arg1[%c0, %c0_0] : memref<2x128xf32, #tpu.memory_space<vmem>>, vector<2x128xf32>
    %c0_1 = arith.constant 0 : index
    %c0_2 = arith.constant 0 : index
    %1 = vector.load %arg2[%c0_1, %c0_2] : memref<32x2xf32, #tpu.memory_space<vmem>>, vector<32x2xf32>
    %2 = vector.extract_strided_slice %1 {offsets = [0, 0], sizes = [32, 1], strides = [1, 1]} : vector<32x2xf32> to vector<32x1xf32>
    %3 = vector.extract_strided_slice %0 {offsets = [0, 0], sizes = [1, 128], strides = [1, 1]} : vector<2x128xf32> to vector<1x128xf32>
    %4 = vector.broadcast %2 : vector<32x1xf32> to vector<32x128xf32>
    %5 = vector.broadcast %3 : vector<1x128xf32> to vector<32x128xf32>
    %6 = arith.mulf %4, %5 : vector<32x128xf32>
    %7 = vector.extract_strided_slice %1 {offsets = [0, 1], sizes = [32, 1], strides = [1, 1]} : vector<32x2xf32> to vector<32x1xf32>
    %8 = vector.extract_strided_slice %0 {offsets = [1, 0], sizes = [1, 128], strides = [1, 1]} : vector<2x128xf32> to vector<1x128xf32>
    %9 = vector.broadcast %7 : vector<32x1xf32> to vector<32x128xf32>
    %10 = vector.broadcast %8 : vector<1x128xf32> to vector<32x128xf32>
    %11 = arith.mulf %9, %10 : vector<32x128xf32>
    %12 = arith.addf %6, %11 : vector<32x128xf32>
    %c0_3 = arith.constant 0 : index
    %c0_4 = arith.constant 0 : index
    %13 = vector.load %arg3[%c0_3, %c0_4] : memref<32x1xf32, #tpu.memory_space<vmem>>, vector<32x1xf32>
    %14 = vector.broadcast %13 : vector<32x1xf32> to vector<32x128xf32>
    %15 = arith.addf %12, %14 : vector<32x128xf32>
    %cst = arith.constant 0.000000e+00 : f32
    %16 = vector.broadcast %cst : f32 to vector<32x128xf32>
    %17 = arith.cmpf ogt, %15, %16 : vector<32x128xf32>
    %cst_5 = arith.constant 0.00999999977 : f32
    %18 = vector.broadcast %cst_5 : f32 to vector<32x128xf32>
    %19 = arith.mulf %18, %15 : vector<32x128xf32>
    %20 = arith.select %17, %15, %19 : vector<32x128xi1>, vector<32x128xf32>
    %c0_6 = arith.constant 0 : index
    %c0_7 = arith.constant 0 : index
    %21 = vector.load %arg4[%c0_6, %c0_7] : memref<2x32xf32, #tpu.memory_space<vmem>>, vector<2x32xf32>
    %cst_8 = arith.constant dense<0.000000e+00> : vector<2x128xf32>
    %22 = tpu.matmul %21, %20, %cst_8 {dimension_numbers = #tpu.dot_dimension_numbers<[1], [0], [0], [1], [0, 0, 1, 1], [], []>} : vector<2x32xf32>, vector<32x128xf32>, vector<2x128xf32> -> vector<2x128xf32>
    %c0_9 = arith.constant 0 : index
    %c0_10 = arith.constant 0 : index
    %23 = vector.load %arg5[%c0_9, %c0_10] : memref<2x1xf32, #tpu.memory_space<vmem>>, vector<2x1xf32>
    %24 = vector.broadcast %23 : vector<2x1xf32> to vector<2x128xf32>
    %25 = arith.addf %22, %24 : vector<2x128xf32>
    %c0_11 = arith.constant 0 : index
    %c0_12 = arith.constant 0 : index
    %26 = vector.load %arg6[%c0_11, %c0_12] : memref<2x128xf32, #tpu.memory_space<vmem>>, vector<2x128xf32>
    tpu.vector_store %arg6[%c0_11, %c0_12], %25 {strides = array<i32>} : memref<2x128xf32, #tpu.memory_space<vmem>>, vector<2x128xf32>,
    return
  }
  func.func @transform_0(%arg0: i32) -> (i32, i32) {
    %c0_i32 = arith.constant 0 : i32
    %c0_i32_0 = arith.constant 0 : i32
    return %c0_i32, %arg0 : i32, i32
  }
  func.func @transform_1(%arg0: i32) -> (i32, i32) {
    %c0_i32 = arith.constant 0 : i32
    %c0_i32_0 = arith.constant 0 : i32
    %c0_i32_1 = arith.constant 0 : i32
    return %c0_i32, %c0_i32_0 : i32, i32
  }
  func.func @transform_2(%arg0: i32) -> (i32, i32) {
    %c0_i32 = arith.constant 0 : i32
    %c0_i32_0 = arith.constant 0 : i32
    %c0_i32_1 = arith.constant 0 : i32
    return %c0_i32, %c0_i32_0 : i32, i32
  }
  func.func @transform_3(%arg0: i32) -> (i32, i32) {
    %c0_i32 = arith.constant 0 : i32
    %c0_i32_0 = arith.constant 0 : i32
    %c0_i32_1 = arith.constant 0 : i32
    return %c0_i32, %c0_i32_0 : i32, i32
  }
  func.func @transform_4(%arg0: i32) -> (i32, i32) {
    %c0_i32 = arith.constant 0 : i32
    %c0_i32_0 = arith.constant 0 : i32
    %c0_i32_1 = arith.constant 0 : i32
    return %c0_i32, %c0_i32_0 : i32, i32
  }
  func.func @transform_5(%arg0: i32) -> (i32, i32) {
    %c0_i32 = arith.constant 0 : i32
    %c0_i32_0 = arith.constant 0 : i32
    return %c0_i32, %arg0 : i32, i32
  }
}

</mosaic_0001>

<llo_original>
// kernel: decgm_forward.1
$region0: #{decgm_forward.1}
  #allocation0 [shape = 'u32[]', space=smem, size = 0x4, offset = 0x4, fixed_abs, tag = 'smem constant byte address 0x4 - core index']
  #allocation1 [shape = 'u32[144,128]{1,0:T(1,128)}', space=vmem, size = 0x12000, scoped, tag = 'internal scratch']
  %s0 = inlined_call_operand.vmem [shape: f32[2,128], index: 0, kind: input, shape index: {}]
  %s1 = inlined_call_operand.vmem [shape: f32[32,2], index: 1, kind: input, shape index: {}]
  %s2 = inlined_call_operand.vmem [shape: f32[32,1], index: 2, kind: input, shape index: {}]
  %s3 = inlined_call_operand.vmem [shape: f32[2,32], index: 3, kind: input, shape index: {}]
  %s4 = inlined_call_operand.vmem [shape: f32[2,1], index: 4, kind: input, shape index: {}]
  %s5 = inlined_call_operand.vmem [shape: f32[2,128], index: 5, kind: output, shape index: {}]
  %s6 = sld [smem:[#allocation0]]
  $region30: #{decgm_forward.1} parent=0
    _
  %s8 = ssub.s32 1, %s6
  %s9 = scalar_select 0, %s8, %s6
  // Predicated region
  $region2: #{decgm_forward.1} parent=0 // pred_check
    _
  $region3: #{decgm_forward.1} parent=0 // pred_check_branch
    %11 = sbr.rel (0) target = $region5
  $region4: #{decgm_forward.1} parent=0 // pred_region
    _
  $region5: #{decgm_forward.1} parent=0 // pred_fallthru
    _
  // Predicated region
  $region6: #{decgm_forward.1} parent=0 // pred_check
    _
  $region7: #{decgm_forward.1} parent=0 // pred_check_branch
    %13 = sbr.rel (0) target = $region9
  $region8: #{decgm_forward.1} parent=0 // pred_region
    _
  $region9: #{decgm_forward.1} parent=0 // pred_fallthru
    _
  // Predicated region
  $region10: #{decgm_forward.1} parent=0 // pred_check
    _
  $region11: #{decgm_forward.1} parent=0 // pred_check_branch
    %15 = sbr.rel (0) target = $region13
  $region12: #{decgm_forward.1} parent=0 // pred_region
    _
  $region13: #{decgm_forward.1} parent=0 // pred_fallthru
    _
  // Predicated region
  $region14: #{decgm_forward.1} parent=0 // pred_check
    _
  $region15: #{decgm_forward.1} parent=0 // pred_check_branch
    %17 = sbr.rel (0) target = $region17
  $region16: #{decgm_forward.1} parent=0 // pred_region
    _
  $region17: #{decgm_forward.1} parent=0 // pred_fallthru
    _
  // Predicated region
  $region18: #{decgm_forward.1} parent=0 // pred_check
    _
  $region19: #{decgm_forward.1} parent=0 // pred_check_branch
    %19 = sbr.rel (0) target = $region21
  $region20: #{decgm_forward.1} parent=0 // pred_region
    _
  $region21: #{decgm_forward.1} parent=0 // pred_fallthru
    _
  %v20 = vld [vmem:[%s0] sm:$0x3]
  %v21 = vld [vmem:[%s1] sm:$0xff]
  %v22 = vld [vmem:[%s1 + $0x8] sm:$0xff]
  %v23 = vld [vmem:[%s1 + $0x10] sm:$0xff]
  %v24 = vld [vmem:[%s1 + $0x18] sm:$0xff]
  %26 = vset.pattern.permute.xlu0 0
  %27 = vperm.xlu0 %26, %v21
  %v28 = vpop.permute.xlu0 %27
  %31 = vset.pattern.permute.xlu0 0
  %32 = vperm.xlu0 %31, %v22
  %v33 = vpop.permute.xlu0 %32
  %36 = vset.pattern.permute.xlu0 0
  %37 = vperm.xlu0 %36, %v23
  %v38 = vpop.permute.xlu0 %37
  %41 = vset.pattern.permute.xlu0 0
  %42 = vperm.xlu0 %41, %v24
  %v43 = vpop.permute.xlu0 %42
  %v45 = vlaneseq
  %v46 = vshrl.u32 %v45, 7
  %v47 = vsub.s32 0, %v46
  %v48 = vrot.slane %v20, %v47
  %v49 = vmul.f32 %v28, %v48
  %v50 = vmul.f32 %v33, %v48
  %v51 = vmul.f32 %v38, %v48
  %v52 = vmul.f32 %v43, %v48
  %53 = vset.pattern.permute.xlu0 1
  %54 = vperm.xlu0 %53, %v21
  %v55 = vpop.permute.xlu0 %54
  %57 = vset.pattern.permute.xlu0 1
  %58 = vperm.xlu0 %57, %v22
  %v59 = vpop.permute.xlu0 %58
  %61 = vset.pattern.permute.xlu0 1
  %62 = vperm.xlu0 %61, %v23
  %v63 = vpop.permute.xlu0 %62
  %65 = vset.pattern.permute.xlu0 1
  %66 = vperm.xlu0 %65, %v24
  %v67 = vpop.permute.xlu0 %66
  %v69 = vlaneseq
  %v70 = vshrl.u32 %v69, 7
  %v71 = vsub.s32 1, %v70
  %v72 = vrot.slane %v20, %v71
  %v73 = vmul.f32 %v55, %v72
  %v74 = vmul.f32 %v59, %v72
  %v75 = vmul.f32 %v63, %v72
  %v76 = vmul.f32 %v67, %v72
  %v77 = vadd.f32 %v49, %v73
  %v78 = vadd.f32 %v50, %v74
  %v79 = vadd.f32 %v51, %v75
  %v80 = vadd.f32 %v52, %v76
  %v81 = vld [vmem:[%s2] sm:$0xff]
  %v82 = vld [vmem:[%s2 + $0x8] sm:$0xff]
  %v83 = vld [vmem:[%s2 + $0x10] sm:$0xff]
  %v84 = vld [vmem:[%s2 + $0x18] sm:$0xff]
  %86 = vset.pattern.permute.xlu0 0
  %87 = vperm.xlu0 %86, %v81
  %v88 = vpop.permute.xlu0 %87
  %91 = vset.pattern.permute.xlu0 0
  %92 = vperm.xlu0 %91, %v82
  %v93 = vpop.permute.xlu0 %92
  %96 = vset.pattern.permute.xlu0 0
  %97 = vperm.xlu0 %96, %v83
  %v98 = vpop.permute.xlu0 %97
  %101 = vset.pattern.permute.xlu0 0
  %102 = vperm.xlu0 %101, %v84
  %v103 = vpop.permute.xlu0 %102
  %v105 = vadd.f32 %v77, %v88
  %v106 = vadd.f32 %v78, %v93
  %v107 = vadd.f32 %v79, %v98
  %v108 = vadd.f32 %v80, %v103
  %vm109 = vcmp.gt.f32.partialorder %v105, 0.0
  %vm110 = vcmp.gt.f32.partialorder %v106, 0.0
  %vm111 = vcmp.gt.f32.partialorder %v107, 0.0
  %vm112 = vcmp.gt.f32.partialorder %v108, 0.0
  %v113 = vmul.f32 %v105, 0.01
  %v114 = vmul.f32 %v106, 0.01
  %v115 = vmul.f32 %v107, 0.01
  %v116 = vmul.f32 %v108, 0.01
  %v117 = vsel %vm109, %v105, %v113
  %v118 = vsel %vm110, %v106, %v114
  %v119 = vsel %vm111, %v107, %v115
  %v120 = vsel %vm112, %v108, %v116
  %v121 = vld [vmem:[%s3] sm:$0x3]
  %v122 = vld [vmem:[%s4] sm:$0x3]
  %124 = vset.pattern.permute.xlu0 0
  %125 = vperm.xlu0 %124, %v122
  %v126 = vpop.permute.xlu0 %125
  %vm128 = vcmask 261120
  %v130 = vsel %vm128, %v121, 0
  %132 = vmatprep.subr.mxu0 0.0
  %133 = vmatpush1.msra.mxu0 %v117
  %134 = vmatprep.subr.mxu0 0.0
  %135 = vmatpush1.msra.mxu0 %v118
  %136 = vmatprep.subr.mxu0 0.0
  %137 = vmatpush1.msra.mxu0 %v119
  %138 = vmatprep.subr.mxu0 0.0
  %139 = vmatpush1.msra.mxu0 %v120
  %140 = vmatprep.subr.mxu0 0.0
  %141 = vmatpush1.msra.mxu0 0.0
  %142 = vmatprep.subr.mxu0 0.0
  %143 = vmatpush1.msra.mxu0 0.0
  %144 = vmatprep.subr.mxu0 0.0
  %145 = vmatpush1.msra.mxu0 0.0
  %146 = vmatprep.subr.mxu0 0.0
  %147 = vmatpush1.msra.mxu0 0.0
  %148 = vmatprep.subr.mxu0 0.0
  %149 = vmatpush1.msra.mxu0 0.0
  %150 = vmatprep.subr.mxu0 0.0
  %151 = vmatpush1.msra.mxu0 0.0
  %152 = vmatprep.subr.mxu0 0.0
  %153 = vmatpush1.msra.mxu0 0.0
  %154 = vmatprep.subr.mxu0 0.0
  %155 = vmatpush1.msra.mxu0 0.0
  %156 = vmatprep.subr.mxu0 0.0
  %157 = vmatpush1.msra.mxu0 0.0
  %158 = vmatprep.subr.mxu0 0.0
  %159 = vmatpush1.msra.mxu0 0.0
  %160 = vmatprep.subr.mxu0 0.0
  %161 = vmatpush1.msra.mxu0 0.0
  %162 = vmatprep.subr.mxu0 0.0
  %163 = vmatpush1.msra.mxu0 0.0
  %164 = vmatprep.subr.mxu0 0.0
  %165 = vmatpush1.msra.mxu0 0.0
  %166 = vmatprep.subr.mxu0 0.0
  %167 = vmatpush1.msra.mxu0 0.0
  %168 = vmatprep.subr.mxu0 0.0
  %169 = vmatpush1.msra.mxu0 0.0
  %170 = vmatprep.subr.mxu0 0.0
  %171 = vmatpush1.msra.mxu0 0.0
  %172 = vmatprep.subr.mxu0 0.0
  %173 = vmatpush1.msra.mxu0 0.0
  %174 = vmatprep.subr.mxu0 0.0
  %175 = vmatpush1.msra.mxu0 0.0
  %176 = vmatprep.subr.mxu0 0.0
  %177 = vmatpush1.msra.mxu0 0.0
  %178 = vmatprep.subr.mxu0 0.0
  %179 = vmatpush1.msra.mxu0 0.0
  %180 = vmatprep.subr.mxu0 0.0
  %181 = vmatpush1.msra.mxu0 0.0
  %182 = vmatprep.subr.mxu0 0.0
  %183 = vmatpush1.msra.mxu0 0.0
  %184 = vmatprep.subr.mxu0 0.0
  %185 = vmatpush1.msra.mxu0 0.0
  %186 = vmatprep.subr.mxu0 0.0
  %187 = vmatpush1.msra.mxu0 0.0
  %188 = vmatprep.subr.mxu0 0.0
  %189 = vmatpush1.msra.mxu0 0.0
  %190 = vmatprep.subr.mxu0 0.0
  %191 = vmatpush1.msra.mxu0 0.0
  %192 = vmatprep.subr.mxu0 0.0
  %193 = vmatpush1.msra.mxu0 0.0
  %194 = vmatprep.subr.mxu0 0.0
  %195 = vmatpush1.msra.mxu0 0.0
  %196 = vmatprep.mubr.f32.mxu0 0.0
  %197 = vmatmul.mubr.f32.gmra.mrb[0].mxu0 %v130
  %v198 = vpop.f32.mrb[0].mxu0
  %v199 = vadd.f32 %v126, %v198
  %v200 = vpop.f32.mrb[0].mxu0
  %201 = vdwg.mxu0
  %202 = vst [vmem:[%s5] sm:$0x3] %v199
  // Predicated region
  $region22: #{decgm_forward.1} parent=0 // pred_check
    _
  $region23: #{decgm_forward.1} parent=0 // pred_check_branch
    %204 = sbr.rel (0) target = $region25
  $region24: #{decgm_forward.1} parent=0 // pred_region
    _
  $region25: #{decgm_forward.1} parent=0 // pred_fallthru
    _
  // Predicated region
  $region26: #{decgm_forward.1} parent=0 // pred_check
    _
  $region27: #{decgm_forward.1} parent=0 // pred_check_branch
    %206 = sbr.rel (0) target = $region29
  $region28: #{decgm_forward.1} parent=0 // pred_region
    _
  $region29: #{decgm_forward.1} parent=0 // pred_fallthru
    _

</llo_original>
